<compile_context>
chip_gen: v7x
topology: tpu7x:2x2x1
jax: 0.10.0
libtpu: 0.0.40
codegen_flags: <defaults>
</compile_context>

<pallas_src>
import math
from math import ceil

import jax
import jax.numpy as jnp
import numpy as np
from jax.experimental import pallas as pl
from jax.experimental.pallas import tpu as pltpu

# ---- module configuration (small synthetic sizes consistent with the spec) --
BATCH = 2
C_IN = 3                                  # SPP_Embeddings default in_channels
IMG = 16                                  # img_size -> 4x4 grid of 4x4 patches
GRID = (4, 4)
NUM_PATCHES = GRID[0] * GRID[1]           # 16
KSIZE = 4                                 # PatchCNN kernel_size
C_OUT = 12                                # PatchCNN out_channels
PATCH_DIM = C_IN * KSIZE * KSIZE          # 48 (im2col row length)
POOL_SIZES = (1, 2, 4)
SPP_DIM = C_OUT * sum(p * p for p in POOL_SIZES)   # 252 == fc in_features
HIDDEN = 32                               # config.hidden_size
SEQ = NUM_PATCHES + 1                     # 17 = cls token + patches
# TODO(synk): nn.Dropout(config.transformer.dropout_rate) is treated as
# inference-mode identity (module in eval()); forward() print()s are omitted.


def spp_emb_kernel(p_ref, w1_ref, w2_ref, cls_ref, posb_ref, out_ref):
    """Single invocation (no grid); whole problem lives in VMEM.

    p_ref    : (B*16, 49)  im2col patches + ones column (conv bias folded)
    w1_ref   : (49, 12)    PatchCNN conv weight (im2col layout) + bias row
    w2_ref   : (12, H)     fc weight with SPP replication pre-folded
    cls_ref  : (1, H)      cls_token + position_embeddings[0]
    posb_ref : (16, H)     position_embeddings[1:] + fc bias
    out_ref  : (B, 17, H)  embeddings
    """
    bsz, seq, hid = out_ref.shape
    npatch = seq - 1

    # PatchCNN: conv-as-matmul (+bias via ones column) + ReLU, one MXU pass.
    v = jnp.maximum(
        jnp.dot(p_ref[...], w1_ref[...],
                preferred_element_type=jnp.float32,
                precision=jax.lax.Precision.HIGHEST), 0.0)       # (B*16, 12)

    # SPP + fc folded into a single matmul (bias folded into posb rows).
    feats = jnp.dot(v, w2_ref[...],
                    preferred_element_type=jnp.float32,
                    precision=jax.lax.Precision.HIGHEST)         # (B*16, H)

    # Two vectorized stores: cls row (broadcast over batch) + patch body.
    out_ref[:, pl.ds(0, 1), :] = jnp.broadcast_to(cls_ref[...], (bsz, 1, hid))
    out_ref[:, pl.ds(1, npatch), :] = (
        feats.reshape(bsz, npatch, hid) + posb_ref[...][None, :, :])


def _pad_and_im2col(x):
    """pad_image + split_into_patches as pure layout ops -> (B*16, C*ph*pw)."""
    B, C, H, W = x.shape
    ph, pw = ceil(H / GRID[0]), ceil(W / GRID[1])
    tH, tW = ph * GRID[0], pw * GRID[1]
    pt, plft = (tH - H) // 2, (tW - W) // 2
    x = jnp.pad(x, ((0, 0), (0, 0), (pt, tH - H - pt), (plft, tW - W - plft)))
    xr = x.reshape(B, C, GRID[0], ph, GRID[1], pw)
    xr = xr.transpose(0, 2, 4, 1, 3, 5)          # (B, gi, gj, C, ph, pw)
    return xr.reshape(B * GRID[0] * GRID[1], C * ph * pw), ph, pw


def spp_embeddings_forward(x, params):
    wconv, bconv, wfc, bfc, cls_tok, pos_emb = params
    B = x.shape[0]
    patches, ph, pw = _pad_and_im2col(x)                       # (B*16, 48)
    assert (ph, pw) == (KSIZE, KSIZE), "kernel specialised to 1x1 conv output"
    # TODO(synk): for img sizes where the per-patch conv map is larger than 1x1
    # the SPP pooling would have to be computed in-kernel instead of folded.

    n_rows = B * NUM_PATCHES

    # Fold the conv bias into the first matmul via a ones column.
    patches_aug = jnp.concatenate(
        [patches, jnp.ones((n_rows, 1), patches.dtype)], axis=1)     # (B*16, 49)
    wc_aug = jnp.concatenate(
        [wconv.reshape(C_OUT, PATCH_DIM).T, bconv.reshape(1, C_OUT)],
        axis=0)                                                      # (49, 12)

    # Fold SPP (adaptive pools of a 1x1 map copy each channel 1/4/16 times)
    # into the fc weight: one effective (12, H) matrix -> one MXU pass.
    wfc_t = wfc.T                                                    # (252, H)
    weff = (wfc_t[:C_OUT]
            + wfc_t[C_OUT:5 * C_OUT].reshape(C_OUT, 4, HIDDEN).sum(axis=1)
            + wfc_t[5 * C_OUT:].reshape(C_OUT, 16, HIDDEN).sum(axis=1))

    # Fold fc bias into position rows 1..16, cls_token into position row 0.
    pos2 = pos_emb.reshape(SEQ, HIDDEN)
    cls_row = cls_tok.reshape(1, HIDDEN) + pos2[0:1, :]              # (1, H)
    pos_body = pos2[1:, :] + bfc.reshape(1, HIDDEN)                  # (16, H)

    cost = pl.CostEstimate(
        flops=(2 * n_rows * (PATCH_DIM + 1) * C_OUT
               + 2 * n_rows * C_OUT * HIDDEN
               + 2 * n_rows * HIDDEN),
        transcendentals=0,
        bytes_accessed=4 * int(patches_aug.size + wc_aug.size + weff.size
                               + cls_row.size + pos_body.size
                               + B * SEQ * HIDDEN),
    )

    vmem = pl.BlockSpec(memory_space=pltpu.MemorySpace.VMEM)
    return pl.pallas_call(
        spp_emb_kernel,
        out_shape=jax.ShapeDtypeStruct((B, SEQ, HIDDEN), jnp.float32),
        in_specs=[vmem] * 5,                 # no grid: no pipeline machinery
        out_specs=pl.BlockSpec(memory_space=pltpu.MemorySpace.VMEM),
        cost_estimate=cost,
    )(patches_aug, wc_aug, weff, cls_row, pos_body)


# ---------------- pure-JAX reference (faithful port of the module) ----------
def spp_embeddings_reference(x, params):
    wconv, bconv, wfc, bfc, cls_tok, pos_emb = params
    B = x.shape[0]
    patches, _, _ = _pad_and_im2col(x)
    # PatchCNN on each 4x4 patch -> 1x1 x 12 map, ReLU.
    v = jnp.maximum(
        jnp.dot(patches, wconv.reshape(C_OUT, -1).T,
                precision=jax.lax.Precision.HIGHEST) + bconv, 0.0)
    # SPP: adaptive avg pools (1,2,4) of a 1x1 map replicate each channel value
    # (channel-major flatten order, like pooled.view(batch, -1)).
    spp = jnp.concatenate(
        [jnp.repeat(v, p * p, axis=1) for p in POOL_SIZES], axis=1)  # (B*16, 252)
    f = (jnp.dot(spp, wfc.T, precision=jax.lax.Precision.HIGHEST)
         + bfc).reshape(B, NUM_PATCHES, HIDDEN)
    cls = jnp.broadcast_to(cls_tok, (B, 1, HIDDEN))
    return jnp.concatenate([cls, f], axis=1) + pos_emb


if __name__ == "__main__":
    key = jax.random.PRNGKey(0)
    kx, k1, k2, k3, k4, k5, k6 = jax.random.split(key, 7)
    x = jax.random.normal(kx, (BATCH, C_IN, IMG, IMG), jnp.float32)

    a_conv = 1.0 / math.sqrt(C_IN * KSIZE * KSIZE)
    wconv = jax.random.uniform(k1, (C_OUT, C_IN, KSIZE, KSIZE), jnp.float32,
                               -a_conv, a_conv)
    bconv = jax.random.uniform(k2, (C_OUT,), jnp.float32, -a_conv, a_conv)
    a_fc = 1.0 / math.sqrt(SPP_DIM)
    wfc = jax.random.uniform(k3, (HIDDEN, SPP_DIM), jnp.float32, -a_fc, a_fc)
    bfc = jax.random.uniform(k4, (HIDDEN,), jnp.float32, -a_fc, a_fc)
    # The module initializes these to zeros; small random values are used here
    # so the test actually exercises the cls/position-embedding path.
    cls_tok = 0.02 * jax.random.normal(k5, (1, 1, HIDDEN), jnp.float32)
    pos_emb = 0.02 * jax.random.normal(k6, (1, SEQ, HIDDEN), jnp.float32)
    params = (wconv, bconv, wfc, bfc, cls_tok, pos_emb)

    out = spp_embeddings_forward(x, params)
    jax.block_until_ready(out)

    ref = spp_embeddings_reference(x, params)
    np.testing.assert_allclose(np.asarray(out), np.asarray(ref),
                               atol=1e-4, rtol=1e-4)
    print("KERNEL_OK")
</pallas_src>

<mosaic_0001>
module attributes {stable_mosaic.version = 11 : i64} {
  func.func @spp_emb_kernel(%arg0: memref<32x49xf32, #tpu.memory_space<vmem>>, %arg1: memref<49x12xf32, #tpu.memory_space<vmem>>, %arg2: memref<12x32xf32, #tpu.memory_space<vmem>>, %arg3: memref<1x32xf32, #tpu.memory_space<vmem>>, %arg4: memref<16x32xf32, #tpu.memory_space<vmem>>, %arg5: memref<2x17x32xf32, #tpu.memory_space<vmem>>) attributes {dimension_semantics = [], scalar_prefetch = 0 : i64, scratch_operands = 0 : i64, tpu.core_type = #tpu.core_type<tc>} {
    %c0 = arith.constant 0 : index
    %c0_0 = arith.constant 0 : index
    %0 = vector.load %arg0[%c0, %c0_0] : memref<32x49xf32, #tpu.memory_space<vmem>>, vector<32x49xf32>
    %c0_1 = arith.constant 0 : index
    %c0_2 = arith.constant 0 : index
    %1 = vector.load %arg1[%c0_1, %c0_2] : memref<49x12xf32, #tpu.memory_space<vmem>>, vector<49x12xf32>
    %cst = arith.constant dense<0.000000e+00> : vector<32x12xf32>
    %2 = tpu.matmul %0, %1, %cst {dimension_numbers = #tpu.dot_dimension_numbers<[1], [0], [0], [1], [0, 0, 1, 1], [], []>, precision = #tpu.contract_precision<fp32>} : vector<32x49xf32>, vector<49x12xf32>, vector<32x12xf32> -> vector<32x12xf32>
    %cst_3 = arith.constant 0.000000e+00 : f32
    %3 = vector.broadcast %cst_3 : f32 to vector<32x12xf32>
    %4 = arith.maximumf %2, %3 : vector<32x12xf32>
    %c0_4 = arith.constant 0 : index
    %c0_5 = arith.constant 0 : index
    %5 = vector.load %arg2[%c0_4, %c0_5] : memref<12x32xf32, #tpu.memory_space<vmem>>, vector<12x32xf32>
    %cst_6 = arith.constant dense<0.000000e+00> : vector<32x32xf32>
    %6 = tpu.matmul %4, %5, %cst_6 {dimension_numbers = #tpu.dot_dimension_numbers<[1], [0], [0], [1], [0, 0, 1, 1], [], []>, precision = #tpu.contract_precision<fp32>} : vector<32x12xf32>, vector<12x32xf32>, vector<32x32xf32> -> vector<32x32xf32>
    %c0_7 = arith.constant 0 : index
    %c0_8 = arith.constant 0 : index
    %7 = vector.load %arg3[%c0_7, %c0_8] : memref<1x32xf32, #tpu.memory_space<vmem>>, vector<1x32xf32>
    %8 = vector.shape_cast %7 : vector<1x32xf32> to vector<1x1x32xf32>
    %9 = vector.broadcast %8 : vector<1x1x32xf32> to vector<2x1x32xf32>
    %c0_9 = arith.constant 0 : index
    %c0_10 = arith.constant 0 : index
    %c0_11 = arith.constant 0 : index
    %10 = vector.load %arg5[%c0_9, %c0_10, %c0_11] : memref<2x17x32xf32, #tpu.memory_space<vmem>>, vector<2x1x32xf32>
    tpu.vector_store %arg5[%c0_9, %c0_10, %c0_11], %9 {strides = array<i32>} : memref<2x17x32xf32, #tpu.memory_space<vmem>>, vector<2x1x32xf32>,
    %11 = vector.shape_cast %6 : vector<32x32xf32> to vector<2x16x32xf32>
    %c0_12 = arith.constant 0 : index
    %c0_13 = arith.constant 0 : index
    %12 = vector.load %arg4[%c0_12, %c0_13] : memref<16x32xf32, #tpu.memory_space<vmem>>, vector<16x32xf32>
    %13 = vector.shape_cast %12 : vector<16x32xf32> to vector<1x16x32xf32>
    %14 = vector.broadcast %13 : vector<1x16x32xf32> to vector<2x16x32xf32>
    %15 = arith.addf %11, %14 : vector<2x16x32xf32>
    %c0_14 = arith.constant 0 : index
    %c1 = arith.constant 1 : index
    %c0_15 = arith.constant 0 : index
    %16 = vector.load %arg5[%c0_14, %c1, %c0_15] : memref<2x17x32xf32, #tpu.memory_space<vmem>>, vector<2x16x32xf32>
    tpu.vector_store %arg5[%c0_14, %c1, %c0_15], %15 {strides = array<i32>} : memref<2x17x32xf32, #tpu.memory_space<vmem>>, vector<2x16x32xf32>,
    return
  }
}

</mosaic_0001>

<llo_original>
// kernel: tpu_custom_call.1
$region0: #{tpu_custom_call.1}
  #allocation0 [shape = 'u32[]', space=smem, size = 0x4, offset = 0x4, fixed_abs, tag = 'smem constant byte address 0x4 - core index']
  #allocation1 [shape = 'u32[144,128]{1,0:T(1,128)}', space=vmem, size = 0x12000, scoped, tag = 'internal scratch']
  %s0 = inlined_call_operand.vmem [shape: f32[32,49], index: 0, kind: input, shape index: {}]
  %s1 = inlined_call_operand.vmem [shape: f32[49,12], index: 1, kind: input, shape index: {}]
  %s2 = inlined_call_operand.vmem [shape: f32[12,32], index: 2, kind: input, shape index: {}]
  %s3 = inlined_call_operand.vmem [shape: f32[1,32], index: 3, kind: input, shape index: {}]
  %s4 = inlined_call_operand.vmem [shape: f32[16,32], index: 4, kind: input, shape index: {}]
  %s5 = inlined_call_operand.vmem [shape: f32[2,17,32], index: 5, kind: output, shape index: {}]
  %s6 = sld [smem:[#allocation0]]
  $region30: #{tpu_custom_call.1} parent=0
    _
  %s8 = ssub.s32 1, %s6
  %s9 = scalar_select 0, %s8, %s6
  // Predicated region
  $region2: #{tpu_custom_call.1} parent=0 // pred_check
    _
  $region3: #{tpu_custom_call.1} parent=0 // pred_check_branch
    %11 = sbr.rel (0) target = $region5
  $region4: #{tpu_custom_call.1} parent=0 // pred_region
    _
  $region5: #{tpu_custom_call.1} parent=0 // pred_fallthru
    _
  // Predicated region
  $region6: #{tpu_custom_call.1} parent=0 // pred_check
    _
  $region7: #{tpu_custom_call.1} parent=0 // pred_check_branch
    %13 = sbr.rel (0) target = $region9
  $region8: #{tpu_custom_call.1} parent=0 // pred_region
    _
  $region9: #{tpu_custom_call.1} parent=0 // pred_fallthru
    _
  // Predicated region
  $region10: #{tpu_custom_call.1} parent=0 // pred_check
    _
  $region11: #{tpu_custom_call.1} parent=0 // pred_check_branch
    %15 = sbr.rel (0) target = $region13
  $region12: #{tpu_custom_call.1} parent=0 // pred_region
    _
  $region13: #{tpu_custom_call.1} parent=0 // pred_fallthru
    _
  // Predicated region
  $region14: #{tpu_custom_call.1} parent=0 // pred_check
    _
  $region15: #{tpu_custom_call.1} parent=0 // pred_check_branch
    %17 = sbr.rel (0) target = $region17
  $region16: #{tpu_custom_call.1} parent=0 // pred_region
    _
  $region17: #{tpu_custom_call.1} parent=0 // pred_fallthru
    _
  // Predicated region
  $region18: #{tpu_custom_call.1} parent=0 // pred_check
    _
  $region19: #{tpu_custom_call.1} parent=0 // pred_check_branch
    %19 = sbr.rel (0) target = $region21
  $region20: #{tpu_custom_call.1} parent=0 // pred_region
    _
  $region21: #{tpu_custom_call.1} parent=0 // pred_fallthru
    _
  %v20 = vld [vmem:[%s0] sm:$0xff]
  %v21 = vld [vmem:[%s0 + $0x8] sm:$0xff]
  %v22 = vld [vmem:[%s0 + $0x10] sm:$0xff]
  %v23 = vld [vmem:[%s0 + $0x18] sm:$0xff]
  %v24 = vld [vmem:[%s1] sm:$0xff]
  %v25 = vld [vmem:[%s1 + $0x8] sm:$0xff]
  %v26 = vld [vmem:[%s1 + $0x10] sm:$0xff]
  %v27 = vld [vmem:[%s1 + $0x18] sm:$0xff]
  %v28 = vld [vmem:[%s1 + $0x20] sm:$0xff]
  %v29 = vld [vmem:[%s1 + $0x28] sm:$0xff]
  %v30 = vld [vmem:[%s1 + $0x30] sm:$0x1]
  %vm31 = vcmask 400384
  %v33 = vsel %vm31, %v20, 0
  %v36 = vsel %vm31, %v21, 0
  %v39 = vsel %vm31, %v22, 0
  %v42 = vsel %vm31, %v23, 0
  %vm44 = vcmask 1040384
  %v46 = vsel %vm44, %v30, 0
  %48 = vmatprep.subr.mxu0 0.0
  %v49 = vand.u32 %v24, 4294901760
  %50 = vmatpush1.msra.mxu0 %v49
  %51 = vmatprep.subr.mxu0 0.0
  %v52 = vand.u32 %v25, 4294901760
  %53 = vmatpush1.msra.mxu0 %v52
  %54 = vmatprep.subr.mxu0 0.0
  %v55 = vand.u32 %v26, 4294901760
  %56 = vmatpush1.msra.mxu0 %v55
  %57 = vmatprep.subr.mxu0 0.0
  %v58 = vand.u32 %v27, 4294901760
  %59 = vmatpush1.msra.mxu0 %v58
  %60 = vmatprep.subr.mxu0 0.0
  %v61 = vand.u32 %v28, 4294901760
  %62 = vmatpush1.msra.mxu0 %v61
  %63 = vmatprep.subr.mxu0 0.0
  %v64 = vand.u32 %v29, 4294901760
  %65 = vmatpush1.msra.mxu0 %v64
  %66 = vmatprep.subr.mxu0 0.0
  %v67 = vand.u32 %v46, 4294901760
  %68 = vmatpush1.msra.mxu0 %v67
  %69 = vmatprep.subr.mxu0 0.0
  %70 = vmatpush1.msra.mxu0 0.0
  %71 = vmatprep.subr.mxu0 0.0
  %72 = vmatpush1.msra.mxu0 0.0
  %73 = vmatprep.subr.mxu0 0.0
  %74 = vmatpush1.msra.mxu0 0.0
  %75 = vmatprep.subr.mxu0 0.0
  %76 = vmatpush1.msra.mxu0 0.0
  %77 = vmatprep.subr.mxu0 0.0
  %78 = vmatpush1.msra.mxu0 0.0
  %79 = vmatprep.subr.mxu0 0.0
  %80 = vmatpush1.msra.mxu0 0.0
  %81 = vmatprep.subr.mxu0 0.0
  %82 = vmatpush1.msra.mxu0 0.0
  %83 = vmatprep.subr.mxu0 0.0
  %84 = vmatpush1.msra.mxu0 0.0
  %85 = vmatprep.subr.mxu0 0.0
  %86 = vmatpush1.msra.mxu0 0.0
  %87 = vmatprep.subr.mxu0 0.0
  %88 = vmatpush1.msra.mxu0 0.0
  %89 = vmatprep.subr.mxu0 0.0
  %90 = vmatpush1.msra.mxu0 0.0
  %91 = vmatprep.subr.mxu0 0.0
  %92 = vmatpush1.msra.mxu0 0.0
  %93 = vmatprep.subr.mxu0 0.0
  %94 = vmatpush1.msra.mxu0 0.0
  %95 = vmatprep.subr.mxu0 0.0
  %96 = vmatpush1.msra.mxu0 0.0
  %97 = vmatprep.subr.mxu0 0.0
  %98 = vmatpush1.msra.mxu0 0.0
  %99 = vmatprep.subr.mxu0 0.0
  %100 = vmatpush1.msra.mxu0 0.0
  %101 = vmatprep.subr.mxu0 0.0
  %102 = vmatpush1.msra.mxu0 0.0
  %103 = vmatprep.subr.mxu0 0.0
  %104 = vmatpush1.msra.mxu0 0.0
  %105 = vmatprep.subr.mxu0 0.0
  %106 = vmatpush1.msra.mxu0 0.0
  %107 = vmatprep.subr.mxu0 0.0
  %108 = vmatpush1.msra.mxu0 0.0
  %109 = vmatprep.subr.mxu0 0.0
  %110 = vmatpush1.msra.mxu0 0.0
  %111 = vmatprep.subr.mxu0 0.0
  %112 = vmatpush1.msra.mxu0 0.0
  %113 = vmatprep.subr.mxu0 0.0
  %114 = vmatpush1.msra.mxu0 0.0
  %115 = vmatprep.subr.mxu0 0.0
  %116 = vmatpush1.msra.mxu0 0.0
  %117 = vmatprep.subr.mxu0 0.0
  %118 = vmatpush1.msra.mxu0 0.0
  %119 = vmatprep.mubr.f32.mxu0 0.0
  %v120 = vand.u32 %v33, 4294901760
  %v121 = vsub.f32 %v33, %v120
  %v122 = vand.u32 %v121, 4294901760
  %v123 = vsub.f32 %v121, %v122
  %v124 = vand.u32 %v123, 4294901760
  %125 = vmatmul.mubr.f32.gmra.mrb[0].mxu0 %v124
  %v126 = vpop.f32.mrb[0].mxu0
  %v127 = vadd.f32 0.0, %v126
  %v128 = vpop.f32.mrb[0].mxu0
  %129 = vmatprep.mubr.f32.mxu0 0.0
  %v130 = vand.u32 %v36, 4294901760
  %v131 = vsub.f32 %v36, %v130
  %v132 = vand.u32 %v131, 4294901760
  %v133 = vsub.f32 %v131, %v132
  %v134 = vand.u32 %v133, 4294901760
  %135 = vmatmul.mubr.f32.gmra.mrb[0].mxu0 %v134
  %v136 = vpop.f32.mrb[0].mxu0
  %v137 = vadd.f32 0.0, %v136
  %v138 = vpop.f32.mrb[0].mxu0
  %139 = vmatprep.mubr.f32.mxu0 0.0
  %v140 = vand.u32 %v39, 4294901760
  %v141 = vsub.f32 %v39, %v140
  %v142 = vand.u32 %v141, 4294901760
  %v143 = vsub.f32 %v141, %v142
  %v144 = vand.u32 %v143, 4294901760
  %145 = vmatmul.mubr.f32.gmra.mrb[0].mxu0 %v144
  %v146 = vpop.f32.mrb[0].mxu0
  %v147 = vadd.f32 0.0, %v146
  %v148 = vpop.f32.mrb[0].mxu0
  %149 = vmatprep.mubr.f32.mxu0 0.0
  %v150 = vand.u32 %v42, 4294901760
  %v151 = vsub.f32 %v42, %v150
  %v152 = vand.u32 %v151, 4294901760
  %v153 = vsub.f32 %v151, %v152
  %v154 = vand.u32 %v153, 4294901760
  %155 = vmatmul.mubr.f32.gmra.mrb[0].mxu0 %v154
  %v156 = vpop.f32.mrb[0].mxu0
  %v157 = vadd.f32 0.0, %v156
  %v158 = vpop.f32.mrb[0].mxu0
  %159 = vdwg.mxu0
  %160 = vmatprep.subr.mxu0 0.0
  %v161 = vand.u32 %v24, 4294901760
  %v162 = vsub.f32 %v24, %v161
  %v163 = vand.u32 %v162, 4294901760
  %v164 = vsub.f32 %v162, %v163
  %v165 = vand.u32 %v164, 4294901760
  %166 = vmatpush1.msra.mxu0 %v165
  %167 = vmatprep.subr.mxu0 0.0
  %v168 = vand.u32 %v25, 4294901760
  %v169 = vsub.f32 %v25, %v168
  %v170 = vand.u32 %v169, 4294901760
  %v171 = vsub.f32 %v169, %v170
  %v172 = vand.u32 %v171, 4294901760
  %173 = vmatpush1.msra.mxu0 %v172
  %174 = vmatprep.subr.mxu0 0.0
  %v175 = vand.u32 %v26, 4294901760
  %v176 = vsub.f32 %v26, %v175
  %v177 = vand.u32 %v176, 4294901760
  %v178 = vsub.f32 %v176, %v177
  %v179 = vand.u32 %v178, 4294901760
  %180 = vmatpush1.msra.mxu0 %v179
  %181 = vmatprep.subr.mxu0 0.0
  %v182 = vand.u32 %v27, 4294901760
  %v183 = vsub.f32 %v27, %v182
  %v184 = vand.u32 %v183, 4294901760
  %v185 = vsub.f32 %v183, %v184
  %v186 = vand.u32 %v185, 4294901760
  %187 = vmatpush1.msra.mxu0 %v186
  %188 = vmatprep.subr.mxu0 0.0
  %v189 = vand.u32 %v28, 4294901760
  %v190 = vsub.f32 %v28, %v189
  %v191 = vand.u32 %v190, 4294901760
  %v192 = vsub.f32 %v190, %v191
  %v193 = vand.u32 %v192, 4294901760
  %194 = vmatpush1.msra.mxu0 %v193
  %195 = vmatprep.subr.mxu0 0.0
  %v196 = vand.u32 %v29, 4294901760
  %v197 = vsub.f32 %v29, %v196
  %v198 = vand.u32 %v197, 4294901760
  %v199 = vsub.f32 %v197, %v198
  %v200 = vand.u32 %v199, 4294901760
  %201 = vmatpush1.msra.mxu0 %v200
  %202 = vmatprep.subr.mxu0 0.0
  %v203 = vand.u32 %v46, 4294901760
  %v204 = vsub.f32 %v46, %v203
  %v205 = vand.u32 %v204, 4294901760
  %v206 = vsub.f32 %v204, %v205
  %v207 = vand.u32 %v206, 4294901760
  %208 = vmatpush1.msra.mxu0 %v207
  %209 = vmatprep.subr.mxu0 0.0
  %210 = vmatpush1.msra.mxu0 0.0
  %211 = vmatprep.subr.mxu0 0.0
  %212 = vmatpush1.msra.mxu0 0.0
  %213 = vmatprep.subr.mxu0 0.0
  %214 = vmatpush1.msra.mxu0 0.0
  %215 = vmatprep.subr.mxu0 0.0
  %216 = vmatpush1.msra.mxu0 0.0
  %217 = vmatprep.subr.mxu0 0.0
  %218 = vmatpush1.msra.mxu0 0.0
  %219 = vmatprep.subr.mxu0 0.0
  %220 = vmatpush1.msra.mxu0 0.0
  %221 = vmatprep.subr.mxu0 0.0
  %222 = vmatpush1.msra.mxu0 0.0
  %223 = vmatprep.subr.mxu0 0.0
  %224 = vmatpush1.msra.mxu0 0.0
  %225 = vmatprep.subr.mxu0 0.0
  %226 = vmatpush1.msra.mxu0 0.0
  %227 = vmatprep.subr.mxu0 0.0
  %228 = vmatpush1.msra.mxu0 0.0
  %229 = vmatprep.subr.mxu0 0.0
  %230 = vmatpush1.msra.mxu0 0.0
  %231 = vmatprep.subr.mxu0 0.0
  %232 = vmatpush1.msra.mxu0 0.0
  %233 = vmatprep.subr.mxu0 0.0
  %234 = vmatpush1.msra.mxu0 0.0
  %235 = vmatprep.subr.mxu0 0.0
  %236 = vmatpush1.msra.mxu0 0.0
  %237 = vmatprep.subr.mxu0 0.0
  %238 = vmatpush1.msra.mxu0 0.0
  %239 = vmatprep.subr.mxu0 0.0
  %240 = vmatpush1.msra.mxu0 0.0
  %241 = vmatprep.subr.mxu0 0.0
  %242 = vmatpush1.msra.mxu0 0.0
  %243 = vmatprep.subr.mxu0 0.0
  %244 = vmatpush1.msra.mxu0 0.0
  %245 = vmatprep.subr.mxu0 0.0
  %246 = vmatpush1.msra.mxu0 0.0
  %247 = vmatprep.subr.mxu0 0.0
  %248 = vmatpush1.msra.mxu0 0.0
  %249 = vmatprep.subr.mxu0 0.0
  %250 = vmatpush1.msra.mxu0 0.0
  %251 = vmatprep.subr.mxu0 0.0
  %252 = vmatpush1.msra.mxu0 0.0
  %253 = vmatprep.subr.mxu0 0.0
  %254 = vmatpush1.msra.mxu0 0.0
  %255 = vmatprep.subr.mxu0 0.0
  %256 = vmatpush1.msra.mxu0 0.0
  %257 = vmatprep.subr.mxu0 0.0
  %258 = vmatpush1.msra.mxu0 0.0
  %259 = vmatprep.mubr.f32.mxu0 0.0
  %v260 = vand.u32 %v33, 4294901760
  %261 = vmatmul.mubr.f32.gmra.mrb[0].mxu0 %v260
  %v262 = vpop.f32.mrb[0].mxu0
  %v263 = vadd.f32 %v127, %v262
  %v264 = vpop.f32.mrb[0].mxu0
  %265 = vmatprep.mubr.f32.mxu0 0.0
  %v266 = vand.u32 %v36, 4294901760
  %267 = vmatmul.mubr.f32.gmra.mrb[0].mxu0 %v266
  %v268 = vpop.f32.mrb[0].mxu0
  %v269 = vadd.f32 %v137, %v268
  %v270 = vpop.f32.mrb[0].mxu0
  %271 = vmatprep.mubr.f32.mxu0 0.0
  %v272 = vand.u32 %v39, 4294901760
  %273 = vmatmul.mubr.f32.gmra.mrb[0].mxu0 %v272
  %v274 = vpop.f32.mrb[0].mxu0
  %v275 = vadd.f32 %v147, %v274
  %v276 = vpop.f32.mrb[0].mxu0
  %277 = vmatprep.mubr.f32.mxu0 0.0
  %v278 = vand.u32 %v42, 4294901760
  %279 = vmatmul.mubr.f32.gmra.mrb[0].mxu0 %v278
  %v280 = vpop.f32.mrb[0].mxu0
  %v281 = vadd.f32 %v157, %v280
  %v282 = vpop.f32.mrb[0].mxu0
  %283 = vdwg.mxu0
  %284 = vmatprep.subr.mxu0 0.0
  %v285 = vand.u32 %v24, 4294901760
  %v286 = vsub.f32 %v24, %v285
  %287 = vmatpush1.msra.mxu0 %v286
  %288 = vmatprep.subr.mxu0 0.0
  %v289 = vand.u32 %v25, 4294901760
  %v290 = vsub.f32 %v25, %v289
  %291 = vmatpush1.msra.mxu0 %v290
  %292 = vmatprep.subr.mxu0 0.0
  %v293 = vand.u32 %v26, 4294901760
  %v294 = vsub.f32 %v26, %v293
  %295 = vmatpush1.msra.mxu0 %v294
  %296 = vmatprep.subr.mxu0 0.0
  %v297 = vand.u32 %v27, 4294901760
  %v298 = vsub.f32 %v27, %v297
  %299 = vmatpush1.msra.mxu0 %v298
  %300 = vmatprep.subr.mxu0 0.0
  %v301 = vand.u32 %v28, 4294901760
  %v302 = vsub.f32 %v28, %v301
  %303 = vmatpush1.msra.mxu0 %v302
  %304 = vmatprep.subr.mxu0 0.0
  %v305 = vand.u32 %v29, 4294901760
  %v306 = vsub.f32 %v29, %v305
  %307 = vmatpush1.msra.mxu0 %v306
  %308 = vmatprep.subr.mxu0 0.0
  %v309 = vand.u32 %v46, 4294901760
  %v310 = vsub.f32 %v46, %v309
  %311 = vmatpush1.msra.mxu0 %v310
  %312 = vmatprep.subr.mxu0 0.0
  %313 = vmatpush1.msra.mxu0 0.0
  %314 = vmatprep.subr.mxu0 0.0
  %315 = vmatpush1.msra.mxu0 0.0
  %316 = vmatprep.subr.mxu0 0.0
  %317 = vmatpush1.msra.mxu0 0.0
  %318 = vmatprep.subr.mxu0 0.0
  %319 = vmatpush1.msra.mxu0 0.0
  %320 = vmatprep.subr.mxu0 0.0
  %321 = vmatpush1.msra.mxu0 0.0
  %322 = vmatprep.subr.mxu0 0.0
  %323 = vmatpush1.msra.mxu0 0.0
  %324 = vmatprep.subr.mxu0 0.0
  %325 = vmatpush1.msra.mxu0 0.0
  %326 = vmatprep.subr.mxu0 0.0
  %327 = vmatpush1.msra.mxu0 0.0
  %328 = vmatprep.subr.mxu0 0.0
  %329 = vmatpush1.msra.mxu0 0.0
  %330 = vmatprep.subr.mxu0 0.0
  %331 = vmatpush1.msra.mxu0 0.0
  %332 = vmatprep.subr.mxu0 0.0
  %333 = vmatpush1.msra.mxu0 0.0
  %334 = vmatprep.subr.mxu0 0.0
  %335 = vmatpush1.msra.mxu0 0.0
  %336 = vmatprep.subr.mxu0 0.0
  %337 = vmatpush1.msra.mxu0 0.0
  %338 = vmatprep.subr.mxu0 0.0
  %339 = vmatpush1.msra.mxu0 0.0
  %340 = vmatprep.subr.mxu0 0.0
  %341 = vmatpush1.msra.mxu0 0.0
  %342 = vmatprep.subr.mxu0 0.0
  %343 = vmatpush1.msra.mxu0 0.0
  %344 = vmatprep.subr.mxu0 0.0
  %345 = vmatpush1.msra.mxu0 0.0
  %346 = vmatprep.subr.mxu0 0.0
  %347 = vmatpush1.msra.mxu0 0.0
  %348 = vmatprep.subr.mxu0 0.0
  %349 = vmatpush1.msra.mxu0 0.0
  %350 = vmatprep.subr.mxu0 0.0
  %351 = vmatpush1.msra.mxu0 0.0
  %352 = vmatprep.subr.mxu0 0.0
  %353 = vmatpush1.msra.mxu0 0.0
  %354 = vmatprep.subr.mxu0 0.0
  %355 = vmatpush1.msra.mxu0 0.0
  %356 = vmatprep.subr.mxu0 0.0
  %357 = vmatpush1.msra.mxu0 0.0
  %358 = vmatprep.subr.mxu0 0.0
  %359 = vmatpush1.msra.mxu0 0.0
  %360 = vmatprep.subr.mxu0 0.0
  %361 = vmatpush1.msra.mxu0 0.0
  %362 = vmatprep.mubr.f32.mxu0 0.0
  %v363 = vand.u32 %v33, 4294901760
  %v364 = vsub.f32 %v33, %v363
  %365 = vmatmul.mubr.f32.gmra.mrb[0].mxu0 %v364
  %v366 = vpop.f32.mrb[0].mxu0
  %v367 = vadd.f32 %v263, %v366
  %v368 = vpop.f32.mrb[0].mxu0
  %369 = vmatprep.mubr.f32.mxu0 0.0
  %v370 = vand.u32 %v36, 4294901760
  %v371 = vsub.f32 %v36, %v370
  %372 = vmatmul.mubr.f32.gmra.mrb[0].mxu0 %v371
  %v373 = vpop.f32.mrb[0].mxu0
  %v374 = vadd.f32 %v269, %v373
  %v375 = vpop.f32.mrb[0].mxu0
  %376 = vmatprep.mubr.f32.mxu0 0.0
  %v377 = vand.u32 %v39, 4294901760
  %v378 = vsub.f32 %v39, %v377
  %379 = vmatmul.mubr.f32.gmra.mrb[0].mxu0 %v378
  %v380 = vpop.f32.mrb[0].mxu0
  %v381 = vadd.f32 %v275, %v380
  %v382 = vpop.f32.mrb[0].mxu0
  %383 = vmatprep.mubr.f32.mxu0 0.0
  %v384 = vand.u32 %v42, 4294901760
  %v385 = vsub.f32 %v42, %v384
  %386 = vmatmul.mubr.f32.gmra.mrb[0].mxu0 %v385
  %v387 = vpop.f32.mrb[0].mxu0
  %v388 = vadd.f32 %v281, %v387
  %v389 = vpop.f32.mrb[0].mxu0
  %390 = vdwg.mxu0
  %391 = vmatprep.subr.mxu0 0.0
  %v392 = vand.u32 %v24, 4294901760
  %393 = vmatpush1.msra.mxu0 %v392
  %394 = vmatprep.subr.mxu0 0.0
  %v395 = vand.u32 %v25, 4294901760
  %396 = vmatpush1.msra.mxu0 %v395
  %397 = vmatprep.subr.mxu0 0.0
  %v398 = vand.u32 %v26, 4294901760
  %399 = vmatpush1.msra.mxu0 %v398
  %400 = vmatprep.subr.mxu0 0.0
  %v401 = vand.u32 %v27, 4294901760
  %402 = vmatpush1.msra.mxu0 %v401
  %403 = vmatprep.subr.mxu0 0.0
  %v404 = vand.u32 %v28, 4294901760
  %405 = vmatpush1.msra.mxu0 %v404
  %406 = vmatprep.subr.mxu0 0.0
  %v407 = vand.u32 %v29, 4294901760
  %408 = vmatpush1.msra.mxu0 %v407
  %409 = vmatprep.subr.mxu0 0.0
  %v410 = vand.u32 %v46, 4294901760
  %411 = vmatpush1.msra.mxu0 %v410
  %412 = vmatprep.subr.mxu0 0.0
  %413 = vmatpush1.msra.mxu0 0.0
  %414 = vmatprep.subr.mxu0 0.0
  %415 = vmatpush1.msra.mxu0 0.0
  %416 = vmatprep.subr.mxu0 0.0
  %417 = vmatpush1.msra.mxu0 0.0
  %418 = vmatprep.subr.mxu0 0.0
  %419 = vmatpush1.msra.mxu0 0.0
  %420 = vmatprep.subr.mxu0 0.0
  %421 = vmatpush1.msra.mxu0 0.0
  %422 = vmatprep.subr.mxu0 0.0
  %423 = vmatpush1.msra.mxu0 0.0
  %424 = vmatprep.subr.mxu0 0.0
  %425 = vmatpush1.msra.mxu0 0.0
  %426 = vmatprep.subr.mxu0 0.0
  %427 = vmatpush1.msra.mxu0 0.0
  %428 = vmatprep.subr.mxu0 0.0
  %429 = vmatpush1.msra.mxu0 0.0
  %430 = vmatprep.subr.mxu0 0.0
  %431 = vmatpush1.msra.mxu0 0.0
  %432 = vmatprep.subr.mxu0 0.0
  %433 = vmatpush1.msra.mxu0 0.0
  %434 = vmatprep.subr.mxu0 0.0
  %435 = vmatpush1.msra.mxu0 0.0
  %436 = vmatprep.subr.mxu0 0.0
  %437 = vmatpush1.msra.mxu0 0.0
  %438 = vmatprep.subr.mxu0 0.0
  %439 = vmatpush1.msra.mxu0 0.0
  %440 = vmatprep.subr.mxu0 0.0
  %441 = vmatpush1.msra.mxu0 0.0
  %442 = vmatprep.subr.mxu0 0.0
  %443 = vmatpush1.msra.mxu0 0.0
  %444 = vmatprep.subr.mxu0 0.0
  %445 = vmatpush1.msra.mxu0 0.0
  %446 = vmatprep.subr.mxu0 0.0
  %447 = vmatpush1.msra.mxu0 0.0
  %448 = vmatprep.subr.mxu0 0.0
  %449 = vmatpush1.msra.mxu0 0.0
  %450 = vmatprep.subr.mxu0 0.0
  %451 = vmatpush1.msra.mxu0 0.0
  %452 = vmatprep.subr.mxu0 0.0
  %453 = vmatpush1.msra.mxu0 0.0
  %454 = vmatprep.subr.mxu0 0.0
  %455 = vmatpush1.msra.mxu0 0.0
  %456 = vmatprep.subr.mxu0 0.0
  %457 = vmatpush1.msra.mxu0 0.0
  %458 = vmatprep.subr.mxu0 0.0
  %459 = vmatpush1.msra.mxu0 0.0
  %460 = vmatprep.subr.mxu0 0.0
  %461 = vmatpush1.msra.mxu0 0.0
  %462 = vmatprep.mubr.f32.mxu0 0.0
  %v463 = vand.u32 %v33, 4294901760
  %v464 = vsub.f32 %v33, %v463
  %v465 = vand.u32 %v464, 4294901760
  %466 = vmatmul.mubr.f32.gmra.mrb[0].mxu0 %v465
  %v467 = vpop.f32.mrb[0].mxu0
  %v468 = vadd.f32 %v367, %v467
  %v469 = vpop.f32.mrb[0].mxu0
  %470 = vmatprep.mubr.f32.mxu0 0.0
  %v471 = vand.u32 %v36, 4294901760
  %v472 = vsub.f32 %v36, %v471
  %v473 = vand.u32 %v472, 4294901760
  %474 = vmatmul.mubr.f32.gmra.mrb[0].mxu0 %v473
  %v475 = vpop.f32.mrb[0].mxu0
  %v476 = vadd.f32 %v374, %v475
  %v477 = vpop.f32.mrb[0].mxu0
  %478 = vmatprep.mubr.f32.mxu0 0.0
  %v479 = vand.u32 %v39, 4294901760
  %v480 = vsub.f32 %v39, %v479
  %v481 = vand.u32 %v480, 4294901760
  %482 = vmatmul.mubr.f32.gmra.mrb[0].mxu0 %v481
  %v483 = vpop.f32.mrb[0].mxu0
  %v484 = vadd.f32 %v381, %v483
  %v485 = vpop.f32.mrb[0].mxu0
  %486 = vmatprep.mubr.f32.mxu0 0.0
  %v487 = vand.u32 %v42, 4294901760
  %v488 = vsub.f32 %v42, %v487
  %v489 = vand.u32 %v488, 4294901760
  %490 = vmatmul.mubr.f32.gmra.mrb[0].mxu0 %v489
  %v491 = vpop.f32.mrb[0].mxu0
  %v492 = vadd.f32 %v388, %v491
  %v493 = vpop.f32.mrb[0].mxu0
  %494 = vdwg.mxu0
  %495 = vmatprep.subr.mxu0 0.0
  %v496 = vand.u32 %v24, 4294901760
  %v497 = vsub.f32 %v24, %v496
  %v498 = vand.u32 %v497, 4294901760
  %499 = vmatpush1.msra.mxu0 %v498
  %500 = vmatprep.subr.mxu0 0.0
  %v501 = vand.u32 %v25, 4294901760
  %v502 = vsub.f32 %v25, %v501
  %v503 = vand.u32 %v502, 4294901760
  %504 = vmatpush1.msra.mxu0 %v503
  %505 = vmatprep.subr.mxu0 0.0
  %v506 = vand.u32 %v26, 4294901760
  %v507 = vsub.f32 %v26, %v506
  %v508 = vand.u32 %v507, 4294901760
  %509 = vmatpush1.msra.mxu0 %v508
  %510 = vmatprep.subr.mxu0 0.0
  %v511 = vand.u32 %v27, 4294901760
  %v512 = vsub.f32 %v27, %v511
  %v513 = vand.u32 %v512, 4294901760
  %514 = vmatpush1.msra.mxu0 %v513
  %515 = vmatprep.subr.mxu0 0.0
  %v516 = vand.u32 %v28, 4294901760
  %v517 = vsub.f32 %v28, %v516
  %v518 = vand.u32 %v517, 4294901760
  %519 = vmatpush1.msra.mxu0 %v518
  %520 = vmatprep.subr.mxu0 0.0
  %v521 = vand.u32 %v29, 4294901760
  %v522 = vsub.f32 %v29, %v521
  %v523 = vand.u32 %v522, 4294901760
  %524 = vmatpush1.msra.mxu0 %v523
  %525 = vmatprep.subr.mxu0 0.0
  %v526 = vand.u32 %v46, 4294901760
  %v527 = vsub.f32 %v46, %v526
  %v528 = vand.u32 %v527, 4294901760
  %529 = vmatpush1.msra.mxu0 %v528
  %530 = vmatprep.subr.mxu0 0.0
  %531 = vmatpush1.msra.mxu0 0.0
  %532 = vmatprep.subr.mxu0 0.0
  %533 = vmatpush1.msra.mxu0 0.0
  %534 = vmatprep.subr.mxu0 0.0
  %535 = vmatpush1.msra.mxu0 0.0
  %536 = vmatprep.subr.mxu0 0.0
  %537 = vmatpush1.msra.mxu0 0.0
  %538 = vmatprep.subr.mxu0 0.0
  %539 = vmatpush1.msra.mxu0 0.0
  %540 = vmatprep.subr.mxu0 0.0
  %541 = vmatpush1.msra.mxu0 0.0
  %542 = vmatprep.subr.mxu0 0.0
  %543 = vmatpush1.msra.mxu0 0.0
  %544 = vmatprep.subr.mxu0 0.0
  %545 = vmatpush1.msra.mxu0 0.0
  %546 = vmatprep.subr.mxu0 0.0
  %547 = vmatpush1.msra.mxu0 0.0
  %548 = vmatprep.subr.mxu0 0.0
  %549 = vmatpush1.msra.mxu0 0.0
  %550 = vmatprep.subr.mxu0 0.0
  %551 = vmatpush1.msra.mxu0 0.0
  %552 = vmatprep.subr.mxu0 0.0
  %553 = vmatpush1.msra.mxu0 0.0
  %554 = vmatprep.subr.mxu0 0.0
  %555 = vmatpush1.msra.mxu0 0.0
  %556 = vmatprep.subr.mxu0 0.0
  %557 = vmatpush1.msra.mxu0 0.0
  %558 = vmatprep.subr.mxu0 0.0
  %559 = vmatpush1.msra.mxu0 0.0
  %560 = vmatprep.subr.mxu0 0.0
  %561 = vmatpush1.msra.mxu0 0.0
  %562 = vmatprep.subr.mxu0 0.0
  %563 = vmatpush1.msra.mxu0 0.0
  %564 = vmatprep.subr.mxu0 0.0
  %565 = vmatpush1.msra.mxu0 0.0
  %566 = vmatprep.subr.mxu0 0.0
  %567 = vmatpush1.msra.mxu0 0.0
  %568 = vmatprep.subr.mxu0 0.0
  %569 = vmatpush1.msra.mxu0 0.0
  %570 = vmatprep.subr.mxu0 0.0
  %571 = vmatpush1.msra.mxu0 0.0
  %572 = vmatprep.subr.mxu0 0.0
  %573 = vmatpush1.msra.mxu0 0.0
  %574 = vmatprep.subr.mxu0 0.0
  %575 = vmatpush1.msra.mxu0 0.0
  %576 = vmatprep.subr.mxu0 0.0
  %577 = vmatpush1.msra.mxu0 0.0
  %578 = vmatprep.subr.mxu0 0.0
  %579 = vmatpush1.msra.mxu0 0.0
  %580 = vmatprep.mubr.f32.mxu0 0.0
  %v581 = vand.u32 %v33, 4294901760
  %582 = vmatmul.mubr.f32.gmra.mrb[0].mxu0 %v581
  %v583 = vpop.f32.mrb[0].mxu0
  %v584 = vadd.f32 %v468, %v583
  %v585 = vpop.f32.mrb[0].mxu0
  %586 = vmatprep.mubr.f32.mxu0 0.0
  %v587 = vand.u32 %v36, 4294901760
  %588 = vmatmul.mubr.f32.gmra.mrb[0].mxu0 %v587
  %v589 = vpop.f32.mrb[0].mxu0
  %v590 = vadd.f32 %v476, %v589
  %v591 = vpop.f32.mrb[0].mxu0
  %592 = vmatprep.mubr.f32.mxu0 0.0
  %v593 = vand.u32 %v39, 4294901760
  %594 = vmatmul.mubr.f32.gmra.mrb[0].mxu0 %v593
  %v595 = vpop.f32.mrb[0].mxu0
  %v596 = vadd.f32 %v484, %v595
  %v597 = vpop.f32.mrb[0].mxu0
  %598 = vmatprep.mubr.f32.mxu0 0.0
  %v599 = vand.u32 %v42, 4294901760
  %600 = vmatmul.mubr.f32.gmra.mrb[0].mxu0 %v599
  %v601 = vpop.f32.mrb[0].mxu0
  %v602 = vadd.f32 %v492, %v601
  %v603 = vpop.f32.mrb[0].mxu0
  %604 = vdwg.mxu0
  %605 = vmatprep.subr.mxu0 0.0
  %v606 = vand.u32 %v24, 4294901760
  %607 = vmatpush1.msra.mxu0 %v606
  %608 = vmatprep.subr.mxu0 0.0
  %v609 = vand.u32 %v25, 4294901760
  %610 = vmatpush1.msra.mxu0 %v609
  %611 = vmatprep.subr.mxu0 0.0
  %v612 = vand.u32 %v26, 4294901760
  %613 = vmatpush1.msra.mxu0 %v612
  %614 = vmatprep.subr.mxu0 0.0
  %v615 = vand.u32 %v27, 4294901760
  %616 = vmatpush1.msra.mxu0 %v615
  %617 = vmatprep.subr.mxu0 0.0
  %v618 = vand.u32 %v28, 4294901760
  %619 = vmatpush1.msra.mxu0 %v618
  %620 = vmatprep.subr.mxu0 0.0
  %v621 = vand.u32 %v29, 4294901760
  %622 = vmatpush1.msra.mxu0 %v621
  %623 = vmatprep.subr.mxu0 0.0
  %v624 = vand.u32 %v46, 4294901760
  %625 = vmatpush1.msra.mxu0 %v624
  %626 = vmatprep.subr.mxu0 0.0
  %627 = vmatpush1.msra.mxu0 0.0
  %628 = vmatprep.subr.mxu0 0.0
  %629 = vmatpush1.msra.mxu0 0.0
  %630 = vmatprep.subr.mxu0 0.0
  %631 = vmatpush1.msra.mxu0 0.0
  %632 = vmatprep.subr.mxu0 0.0
  %633 = vmatpush1.msra.mxu0 0.0
  %634 = vmatprep.subr.mxu0 0.0
  %635 = vmatpush1.msra.mxu0 0.0
  %636 = vmatprep.subr.mxu0 0.0
  %637 = vmatpush1.msra.mxu0 0.0
  %638 = vmatprep.subr.mxu0 0.0
  %639 = vmatpush1.msra.mxu0 0.0
  %640 = vmatprep.subr.mxu0 0.0
  %641 = vmatpush1.msra.mxu0 0.0
  %642 = vmatprep.subr.mxu0 0.0
  %643 = vmatpush1.msra.mxu0 0.0
  %644 = vmatprep.subr.mxu0 0.0
  %645 = vmatpush1.msra.mxu0 0.0
  %646 = vmatprep.subr.mxu0 0.0
  %647 = vmatpush1.msra.mxu0 0.0
  %648 = vmatprep.subr.mxu0 0.0
  %649 = vmatpush1.msra.mxu0 0.0
  %650 = vmatprep.subr.mxu0 0.0
  %651 = vmatpush1.msra.mxu0 0.0
  %652 = vmatprep.subr.mxu0 0.0
  %653 = vmatpush1.msra.mxu0 0.0
  %654 = vmatprep.subr.mxu0 0.0
  %655 = vmatpush1.msra.mxu0 0.0
  %656 = vmatprep.subr.mxu0 0.0
  %657 = vmatpush1.msra.mxu0 0.0
  %658 = vmatprep.subr.mxu0 0.0
  %659 = vmatpush1.msra.mxu0 0.0
  %660 = vmatprep.subr.mxu0 0.0
  %661 = vmatpush1.msra.mxu0 0.0
  %662 = vmatprep.subr.mxu0 0.0
  %663 = vmatpush1.msra.mxu0 0.0
  %664 = vmatprep.subr.mxu0 0.0
  %665 = vmatpush1.msra.mxu0 0.0
  %666 = vmatprep.subr.mxu0 0.0
  %667 = vmatpush1.msra.mxu0 0.0
  %668 = vmatprep.subr.mxu0 0.0
  %669 = vmatpush1.msra.mxu0 0.0
  %670 = vmatprep.subr.mxu0 0.0
  %671 = vmatpush1.msra.mxu0 0.0
  %672 = vmatprep.subr.mxu0 0.0
  %673 = vmatpush1.msra.mxu0 0.0
  %674 = vmatprep.subr.mxu0 0.0
  %675 = vmatpush1.msra.mxu0 0.0
  %676 = vmatprep.mubr.f32.mxu0 0.0
  %v677 = vand.u32 %v33, 4294901760
  %678 = vmatmul.mubr.f32.gmra.mrb[0].mxu0 %v677
  %v679 = vpop.f32.mrb[0].mxu0
  %v680 = vadd.f32 %v584, %v679
  %v681 = vpop.f32.mrb[0].mxu0
  %682 = vmatprep.mubr.f32.mxu0 0.0
  %v683 = vand.u32 %v36, 4294901760
  %684 = vmatmul.mubr.f32.gmra.mrb[0].mxu0 %v683
  %v685 = vpop.f32.mrb[0].mxu0
  %v686 = vadd.f32 %v590, %v685
  %v687 = vpop.f32.mrb[0].mxu0
  %688 = vmatprep.mubr.f32.mxu0 0.0
  %v689 = vand.u32 %v39, 4294901760
  %690 = vmatmul.mubr.f32.gmra.mrb[0].mxu0 %v689
  %v691 = vpop.f32.mrb[0].mxu0
  %v692 = vadd.f32 %v596, %v691
  %v693 = vpop.f32.mrb[0].mxu0
  %694 = vmatprep.mubr.f32.mxu0 0.0
  %v695 = vand.u32 %v42, 4294901760
  %696 = vmatmul.mubr.f32.gmra.mrb[0].mxu0 %v695
  %v697 = vpop.f32.mrb[0].mxu0
  %v698 = vadd.f32 %v602, %v697
  %v699 = vpop.f32.mrb[0].mxu0
  %700 = vdwg.mxu0
  %v701 = vmax.f32 %v680, 0.0
  %v702 = vmax.f32 %v686, 0.0
  %v703 = vmax.f32 %v692, 0.0
  %v704 = vmax.f32 %v698, 0.0
  %v705 = vld [vmem:[%s2] sm:$0xff]
  %v706 = vld [vmem:[%s2 + $0x8] sm:$0xf]
  %vm707 = vcmask 97280
  %v709 = vsel %vm707, %v701, 0
  %v712 = vsel %vm707, %v702, 0
  %v715 = vsel %vm707, %v703, 0
  %v718 = vsel %vm707, %v704, 0
  %vm720 = vcmask 1043456
  %v722 = vsel %vm720, %v706, 0
  %724 = vmatprep.subr.mxu0 0.0
  %v725 = vand.u32 %v705, 4294901760
  %726 = vmatpush1.msra.mxu0 %v725
  %727 = vmatprep.subr.mxu0 0.0
  %v728 = vand.u32 %v722, 4294901760
  %729 = vmatpush1.msra.mxu0 %v728
  %730 = vmatprep.subr.mxu0 0.0
  %731 = vmatpush1.msra.mxu0 0.0
  %732 = vmatprep.subr.mxu0 0.0
  %733 = vmatpush1.msra.mxu0 0.0
  %734 = vmatprep.subr.mxu0 0.0
  %735 = vmatpush1.msra.mxu0 0.0
  %736 = vmatprep.subr.mxu0 0.0
  %737 = vmatpush1.msra.mxu0 0.0
  %738 = vmatprep.subr.mxu0 0.0
  %739 = vmatpush1.msra.mxu0 0.0
  %740 = vmatprep.subr.mxu0 0.0
  %741 = vmatpush1.msra.mxu0 0.0
  %742 = vmatprep.subr.mxu0 0.0
  %743 = vmatpush1.msra.mxu0 0.0
  %744 = vmatprep.subr.mxu0 0.0
  %745 = vmatpush1.msra.mxu0 0.0
  %746 = vmatprep.subr.mxu0 0.0
  %747 = vmatpush1.msra.mxu0 0.0
  %748 = vmatprep.subr.mxu0 0.0
  %749 = vmatpush1.msra.mxu0 0.0
  %750 = vmatprep.subr.mxu0 0.0
  %751 = vmatpush1.msra.mxu0 0.0
  %752 = vmatprep.subr.mxu0 0.0
  %753 = vmatpush1.msra.mxu0 0.0
  %754 = vmatprep.subr.mxu0 0.0
  %755 = vmatpush1.msra.mxu0 0.0
  %756 = vmatprep.subr.mxu0 0.0
  %757 = vmatpush1.msra.mxu0 0.0
  %758 = vmatprep.subr.mxu0 0.0
  %759 = vmatpush1.msra.mxu0 0.0
  %760 = vmatprep.subr.mxu0 0.0
  %761 = vmatpush1.msra.mxu0 0.0
  %762 = vmatprep.subr.mxu0 0.0
  %763 = vmatpush1.msra.mxu0 0.0
  %764 = vmatprep.subr.mxu0 0.0
  %765 = vmatpush1.msra.mxu0 0.0
  %766 = vmatprep.subr.mxu0 0.0
  %767 = vmatpush1.msra.mxu0 0.0
  %768 = vmatprep.subr.mxu0 0.0
  %769 = vmatpush1.msra.mxu0 0.0
  %770 = vmatprep.subr.mxu0 0.0
  %771 = vmatpush1.msra.mxu0 0.0
  %772 = vmatprep.subr.mxu0 0.0
  %773 = vmatpush1.msra.mxu0 0.0
  %774 = vmatprep.subr.mxu0 0.0
  %775 = vmatpush1.msra.mxu0 0.0
  %776 = vmatprep.subr.mxu0 0.0
  %777 = vmatpush1.msra.mxu0 0.0
  %778 = vmatprep.subr.mxu0 0.0
  %779 = vmatpush1.msra.mxu0 0.0
  %780 = vmatprep.subr.mxu0 0.0
  %781 = vmatpush1.msra.mxu0 0.0
  %782 = vmatprep.subr.mxu0 0.0
  %783 = vmatpush1.msra.mxu0 0.0
  %784 = vmatprep.subr.mxu0 0.0
  %785 = vmatpush1.msra.mxu0 0.0
  %786 = vmatprep.subr.mxu0 0.0
  %787 = vmatpush1.msra.mxu0 0.0
  %788 = vmatprep.subr.mxu0 0.0
  %789 = vmatpush1.msra.mxu0 0.0
  %790 = vmatprep.mubr.f32.mxu0 0.0
  %v791 = vand.u32 %v709, 4294901760
  %v792 = vsub.f32 %v709, %v791
  %v793 = vand.u32 %v792, 4294901760
  %v794 = vsub.f32 %v792, %v793
  %v795 = vand.u32 %v794, 4294901760
  %796 = vmatmul.mubr.f32.gmra.mrb[0].mxu0 %v795
  %v797 = vpop.f32.mrb[0].mxu0
  %v798 = vadd.f32 0.0, %v797
  %v799 = vpop.f32.mrb[0].mxu0
  %800 = vmatprep.mubr.f32.mxu0 0.0
  %v801 = vand.u32 %v712, 4294901760
  %v802 = vsub.f32 %v712, %v801
  %v803 = vand.u32 %v802, 4294901760
  %v804 = vsub.f32 %v802, %v803
  %v805 = vand.u32 %v804, 4294901760
  %806 = vmatmul.mubr.f32.gmra.mrb[0].mxu0 %v805
  %v807 = vpop.f32.mrb[0].mxu0
  %v808 = vadd.f32 0.0, %v807
  %v809 = vpop.f32.mrb[0].mxu0
  %810 = vmatprep.mubr.f32.mxu0 0.0
  %v811 = vand.u32 %v715, 4294901760
  %v812 = vsub.f32 %v715, %v811
  %v813 = vand.u32 %v812, 4294901760
  %v814 = vsub.f32 %v812, %v813
  %v815 = vand.u32 %v814, 4294901760
  %816 = vmatmul.mubr.f32.gmra.mrb[0].mxu0 %v815
  %v817 = vpop.f32.mrb[0].mxu0
  %v818 = vadd.f32 0.0, %v817
  %v819 = vpop.f32.mrb[0].mxu0
  %820 = vmatprep.mubr.f32.mxu0 0.0
  %v821 = vand.u32 %v718, 4294901760
  %v822 = vsub.f32 %v718, %v821
  %v823 = vand.u32 %v822, 4294901760
  %v824 = vsub.f32 %v822, %v823
  %v825 = vand.u32 %v824, 4294901760
  %826 = vmatmul.mubr.f32.gmra.mrb[0].mxu0 %v825
  %v827 = vpop.f32.mrb[0].mxu0
  %v828 = vadd.f32 0.0, %v827
  %v829 = vpop.f32.mrb[0].mxu0
  %830 = vdwg.mxu0
  %831 = vmatprep.subr.mxu0 0.0
  %v832 = vand.u32 %v705, 4294901760
  %v833 = vsub.f32 %v705, %v832
  %v834 = vand.u32 %v833, 4294901760
  %v835 = vsub.f32 %v833, %v834
  %v836 = vand.u32 %v835, 4294901760
  %837 = vmatpush1.msra.mxu0 %v836
  %838 = vmatprep.subr.mxu0 0.0
  %v839 = vand.u32 %v722, 4294901760
  %v840 = vsub.f32 %v722, %v839
  %v841 = vand.u32 %v840, 4294901760
  %v842 = vsub.f32 %v840, %v841
  %v843 = vand.u32 %v842, 4294901760
  %844 = vmatpush1.msra.mxu0 %v843
  %845 = vmatprep.subr.mxu0 0.0
  %846 = vmatpush1.msra.mxu0 0.0
  %847 = vmatprep.subr.mxu0 0.0
  %848 = vmatpush1.msra.mxu0 0.0
  %849 = vmatprep.subr.mxu0 0.0
  %850 = vmatpush1.msra.mxu0 0.0
  %851 = vmatprep.subr.mxu0 0.0
  %852 = vmatpush1.msra.mxu0 0.0
  %853 = vmatprep.subr.mxu0 0.0
  %854 = vmatpush1.msra.mxu0 0.0
  %855 = vmatprep.subr.mxu0 0.0
  %856 = vmatpush1.msra.mxu0 0.0
  %857 = vmatprep.subr.mxu0 0.0
  %858 = vmatpush1.msra.mxu0 0.0
  %859 = vmatprep.subr.mxu0 0.0
  %860 = vmatpush1.msra.mxu0 0.0
  %861 = vmatprep.subr.mxu0 0.0
  %862 = vmatpush1.msra.mxu0 0.0
  %863 = vmatprep.subr.mxu0 0.0
  %864 = vmatpush1.msra.mxu0 0.0
  %865 = vmatprep.subr.mxu0 0.0
  %866 = vmatpush1.msra.mxu0 0.0
  %867 = vmatprep.subr.mxu0 0.0
  %868 = vmatpush1.msra.mxu0 0.0
  %869 = vmatprep.subr.mxu0 0.0
  %870 = vmatpush1.msra.mxu0 0.0
  %871 = vmatprep.subr.mxu0 0.0
  %872 = vmatpush1.msra.mxu0 0.0
  %873 = vmatprep.subr.mxu0 0.0
  %874 = vmatpush1.msra.mxu0 0.0
  %875 = vmatprep.subr.mxu0 0.0
  %876 = vmatpush1.msra.mxu0 0.0
  %877 = vmatprep.subr.mxu0 0.0
  %878 = vmatpush1.msra.mxu0 0.0
  %879 = vmatprep.subr.mxu0 0.0
  %880 = vmatpush1.msra.mxu0 0.0
  %881 = vmatprep.subr.mxu0 0.0
  %882 = vmatpush1.msra.mxu0 0.0
  %883 = vmatprep.subr.mxu0 0.0
  %884 = vmatpush1.msra.mxu0 0.0
  %885 = vmatprep.subr.mxu0 0.0
  %886 = vmatpush1.msra.mxu0 0.0
  %887 = vmatprep.subr.mxu0 0.0
  %888 = vmatpush1.msra.mxu0 0.0
  %889 = vmatprep.subr.mxu0 0.0
  %890 = vmatpush1.msra.mxu0 0.0
  %891 = vmatprep.subr.mxu0 0.0
  %892 = vmatpush1.msra.mxu0 0.0
  %893 = vmatprep.subr.mxu0 0.0
  %894 = vmatpush1.msra.mxu0 0.0
  %895 = vmatprep.subr.mxu0 0.0
  %896 = vmatpush1.msra.mxu0 0.0
  %897 = vmatprep.subr.mxu0 0.0
  %898 = vmatpush1.msra.mxu0 0.0
  %899 = vmatprep.subr.mxu0 0.0
  %900 = vmatpush1.msra.mxu0 0.0
  %901 = vmatprep.subr.mxu0 0.0
  %902 = vmatpush1.msra.mxu0 0.0
  %903 = vmatprep.subr.mxu0 0.0
  %904 = vmatpush1.msra.mxu0 0.0
  %905 = vmatprep.mubr.f32.mxu0 0.0
  %v906 = vand.u32 %v709, 4294901760
  %907 = vmatmul.mubr.f32.gmra.mrb[0].mxu0 %v906
  %v908 = vpop.f32.mrb[0].mxu0
  %v909 = vadd.f32 %v798, %v908
  %v910 = vpop.f32.mrb[0].mxu0
  %911 = vmatprep.mubr.f32.mxu0 0.0
  %v912 = vand.u32 %v712, 4294901760
  %913 = vmatmul.mubr.f32.gmra.mrb[0].mxu0 %v912
  %v914 = vpop.f32.mrb[0].mxu0
  %v915 = vadd.f32 %v808, %v914
  %v916 = vpop.f32.mrb[0].mxu0
  %917 = vmatprep.mubr.f32.mxu0 0.0
  %v918 = vand.u32 %v715, 4294901760
  %919 = vmatmul.mubr.f32.gmra.mrb[0].mxu0 %v918
  %v920 = vpop.f32.mrb[0].mxu0
  %v921 = vadd.f32 %v818, %v920
  %v922 = vpop.f32.mrb[0].mxu0
  %923 = vmatprep.mubr.f32.mxu0 0.0
  %v924 = vand.u32 %v718, 4294901760
  %925 = vmatmul.mubr.f32.gmra.mrb[0].mxu0 %v924
  %v926 = vpop.f32.mrb[0].mxu0
  %v927 = vadd.f32 %v828, %v926
  %v928 = vpop.f32.mrb[0].mxu0
  %929 = vdwg.mxu0
  %930 = vmatprep.subr.mxu0 0.0
  %v931 = vand.u32 %v705, 4294901760
  %v932 = vsub.f32 %v705, %v931
  %933 = vmatpush1.msra.mxu0 %v932
  %934 = vmatprep.subr.mxu0 0.0
  %v935 = vand.u32 %v722, 4294901760
  %v936 = vsub.f32 %v722, %v935
  %937 = vmatpush1.msra.mxu0 %v936
  %938 = vmatprep.subr.mxu0 0.0
  %939 = vmatpush1.msra.mxu0 0.0
  %940 = vmatprep.subr.mxu0 0.0
  %941 = vmatpush1.msra.mxu0 0.0
  %942 = vmatprep.subr.mxu0 0.0
  %943 = vmatpush1.msra.mxu0 0.0
  %944 = vmatprep.subr.mxu0 0.0
  %945 = vmatpush1.msra.mxu0 0.0
  %946 = vmatprep.subr.mxu0 0.0
  %947 = vmatpush1.msra.mxu0 0.0
  %948 = vmatprep.subr.mxu0 0.0
  %949 = vmatpush1.msra.mxu0 0.0
  %950 = vmatprep.subr.mxu0 0.0
  %951 = vmatpush1.msra.mxu0 0.0
  %952 = vmatprep.subr.mxu0 0.0
  %953 = vmatpush1.msra.mxu0 0.0
  %954 = vmatprep.subr.mxu0 0.0
  %955 = vmatpush1.msra.mxu0 0.0
  %956 = vmatprep.subr.mxu0 0.0
  %957 = vmatpush1.msra.mxu0 0.0
  %958 = vmatprep.subr.mxu0 0.0
  %959 = vmatpush1.msra.mxu0 0.0
  %960 = vmatprep.subr.mxu0 0.0
  %961 = vmatpush1.msra.mxu0 0.0
  %962 = vmatprep.subr.mxu0 0.0
  %963 = vmatpush1.msra.mxu0 0.0
  %964 = vmatprep.subr.mxu0 0.0
  %965 = vmatpush1.msra.mxu0 0.0
  %966 = vmatprep.subr.mxu0 0.0
  %967 = vmatpush1.msra.mxu0 0.0
  %968 = vmatprep.subr.mxu0 0.0
  %969 = vmatpush1.msra.mxu0 0.0
  %970 = vmatprep.subr.mxu0 0.0
  %971 = vmatpush1.msra.mxu0 0.0
  %972 = vmatprep.subr.mxu0 0.0
  %973 = vmatpush1.msra.mxu0 0.0
  %974 = vmatprep.subr.mxu0 0.0
  %975 = vmatpush1.msra.mxu0 0.0
  %976 = vmatprep.subr.mxu0 0.0
  %977 = vmatpush1.msra.mxu0 0.0
  %978 = vmatprep.subr.mxu0 0.0
  %979 = vmatpush1.msra.mxu0 0.0
  %980 = vmatprep.subr.mxu0 0.0
  %981 = vmatpush1.msra.mxu0 0.0
  %982 = vmatprep.subr.mxu0 0.0
  %983 = vmatpush1.msra.mxu0 0.0
  %984 = vmatprep.subr.mxu0 0.0
  %985 = vmatpush1.msra.mxu0 0.0
  %986 = vmatprep.subr.mxu0 0.0
  %987 = vmatpush1.msra.mxu0 0.0
  %988 = vmatprep.subr.mxu0 0.0
  %989 = vmatpush1.msra.mxu0 0.0
  %990 = vmatprep.subr.mxu0 0.0
  %991 = vmatpush1.msra.mxu0 0.0
  %992 = vmatprep.subr.mxu0 0.0
  %993 = vmatpush1.msra.mxu0 0.0
  %994 = vmatprep.subr.mxu0 0.0
  %995 = vmatpush1.msra.mxu0 0.0
  %996 = vmatprep.subr.mxu0 0.0
  %997 = vmatpush1.msra.mxu0 0.0
  %998 = vmatprep.mubr.f32.mxu0 0.0
  %v999 = vand.u32 %v709, 4294901760
  %v1000 = vsub.f32 %v709, %v999
  %1001 = vmatmul.mubr.f32.gmra.mrb[0].mxu0 %v1000
  %v1002 = vpop.f32.mrb[0].mxu0
  %v1003 = vadd.f32 %v909, %v1002
  %v1004 = vpop.f32.mrb[0].mxu0
  %1005 = vmatprep.mubr.f32.mxu0 0.0
  %v1006 = vand.u32 %v712, 4294901760
  %v1007 = vsub.f32 %v712, %v1006
  %1008 = vmatmul.mubr.f32.gmra.mrb[0].mxu0 %v1007
  %v1009 = vpop.f32.mrb[0].mxu0
  %v1010 = vadd.f32 %v915, %v1009
  %v1011 = vpop.f32.mrb[0].mxu0
  %1012 = vmatprep.mubr.f32.mxu0 0.0
  %v1013 = vand.u32 %v715, 4294901760
  %v1014 = vsub.f32 %v715, %v1013
  %1015 = vmatmul.mubr.f32.gmra.mrb[0].mxu0 %v1014
  %v1016 = vpop.f32.mrb[0].mxu0
  %v1017 = vadd.f32 %v921, %v1016
  %v1018 = vpop.f32.mrb[0].mxu0
  %1019 = vmatprep.mubr.f32.mxu0 0.0
  %v1020 = vand.u32 %v718, 4294901760
  %v1021 = vsub.f32 %v718, %v1020
  %1022 = vmatmul.mubr.f32.gmra.mrb[0].mxu0 %v1021
  %v1023 = vpop.f32.mrb[0].mxu0
  %v1024 = vadd.f32 %v927, %v1023
  %v1025 = vpop.f32.mrb[0].mxu0
  %1026 = vdwg.mxu0
  %1027 = vmatprep.subr.mxu0 0.0
  %v1028 = vand.u32 %v705, 4294901760
  %1029 = vmatpush1.msra.mxu0 %v1028
  %1030 = vmatprep.subr.mxu0 0.0
  %v1031 = vand.u32 %v722, 4294901760
  %1032 = vmatpush1.msra.mxu0 %v1031
  %1033 = vmatprep.subr.mxu0 0.0
  %1034 = vmatpush1.msra.mxu0 0.0
  %1035 = vmatprep.subr.mxu0 0.0
  %1036 = vmatpush1.msra.mxu0 0.0
  %1037 = vmatprep.subr.mxu0 0.0
  %1038 = vmatpush1.msra.mxu0 0.0
  %1039 = vmatprep.subr.mxu0 0.0
  %1040 = vmatpush1.msra.mxu0 0.0
  %1041 = vmatprep.subr.mxu0 0.0
  %1042 = vmatpush1.msra.mxu0 0.0
  %1043 = vmatprep.subr.mxu0 0.0
  %1044 = vmatpush1.msra.mxu0 0.0
  %1045 = vmatprep.subr.mxu0 0.0
  %1046 = vmatpush1.msra.mxu0 0.0
  %1047 = vmatprep.subr.mxu0 0.0
  %1048 = vmatpush1.msra.mxu0 0.0
  %1049 = vmatprep.subr.mxu0 0.0
  %1050 = vmatpush1.msra.mxu0 0.0
  %1051 = vmatprep.subr.mxu0 0.0
  %1052 = vmatpush1.msra.mxu0 0.0
  %1053 = vmatprep.subr.mxu0 0.0
  %1054 = vmatpush1.msra.mxu0 0.0
  %1055 = vmatprep.subr.mxu0 0.0
  %1056 = vmatpush1.msra.mxu0 0.0
  %1057 = vmatprep.subr.mxu0 0.0
  %1058 = vmatpush1.msra.mxu0 0.0
  %1059 = vmatprep.subr.mxu0 0.0
  %1060 = vmatpush1.msra.mxu0 0.0
  %1061 = vmatprep.subr.mxu0 0.0
  %1062 = vmatpush1.msra.mxu0 0.0
  %1063 = vmatprep.subr.mxu0 0.0
  %1064 = vmatpush1.msra.mxu0 0.0
  %1065 = vmatprep.subr.mxu0 0.0
  %1066 = vmatpush1.msra.mxu0 0.0
  %1067 = vmatprep.subr.mxu0 0.0
  %1068 = vmatpush1.msra.mxu0 0.0
  %1069 = vmatprep.subr.mxu0 0.0
  %1070 = vmatpush1.msra.mxu0 0.0
  %1071 = vmatprep.subr.mxu0 0.0
  %1072 = vmatpush1.msra.mxu0 0.0
  %1073 = vmatprep.subr.mxu0 0.0
  %1074 = vmatpush1.msra.mxu0 0.0
  %1075 = vmatprep.subr.mxu0 0.0
  %1076 = vmatpush1.msra.mxu0 0.0
  %1077 = vmatprep.subr.mxu0 0.0
  %1078 = vmatpush1.msra.mxu0 0.0
  %1079 = vmatprep.subr.mxu0 0.0
  %1080 = vmatpush1.msra.mxu0 0.0
  %1081 = vmatprep.subr.mxu0 0.0
  %1082 = vmatpush1.msra.mxu0 0.0
  %1083 = vmatprep.subr.mxu0 0.0
  %1084 = vmatpush1.msra.mxu0 0.0
  %1085 = vmatprep.subr.mxu0 0.0
  %1086 = vmatpush1.msra.mxu0 0.0
  %1087 = vmatprep.subr.mxu0 0.0
  %1088 = vmatpush1.msra.mxu0 0.0
  %1089 = vmatprep.subr.mxu0 0.0
  %1090 = vmatpush1.msra.mxu0 0.0
  %1091 = vmatprep.subr.mxu0 0.0
  %1092 = vmatpush1.msra.mxu0 0.0
  %1093 = vmatprep.mubr.f32.mxu0 0.0
  %v1094 = vand.u32 %v709, 4294901760
  %v1095 = vsub.f32 %v709, %v1094
  %v1096 = vand.u32 %v1095, 4294901760
  %1097 = vmatmul.mubr.f32.gmra.mrb[0].mxu0 %v1096
  %v1098 = vpop.f32.mrb[0].mxu0
  %v1099 = vadd.f32 %v1003, %v1098
  %v1100 = vpop.f32.mrb[0].mxu0
  %1101 = vmatprep.mubr.f32.mxu0 0.0
  %v1102 = vand.u32 %v712, 4294901760
  %v1103 = vsub.f32 %v712, %v1102
  %v1104 = vand.u32 %v1103, 4294901760
  %1105 = vmatmul.mubr.f32.gmra.mrb[0].mxu0 %v1104
  %v1106 = vpop.f32.mrb[0].mxu0
  %v1107 = vadd.f32 %v1010, %v1106
  %v1108 = vpop.f32.mrb[0].mxu0
  %1109 = vmatprep.mubr.f32.mxu0 0.0
  %v1110 = vand.u32 %v715, 4294901760
  %v1111 = vsub.f32 %v715, %v1110
  %v1112 = vand.u32 %v1111, 4294901760
  %1113 = vmatmul.mubr.f32.gmra.mrb[0].mxu0 %v1112
  %v1114 = vpop.f32.mrb[0].mxu0
  %v1115 = vadd.f32 %v1017, %v1114
  %v1116 = vpop.f32.mrb[0].mxu0
  %1117 = vmatprep.mubr.f32.mxu0 0.0
  %v1118 = vand.u32 %v718, 4294901760
  %v1119 = vsub.f32 %v718, %v1118
  %v1120 = vand.u32 %v1119, 4294901760
  %1121 = vmatmul.mubr.f32.gmra.mrb[0].mxu0 %v1120
  %v1122 = vpop.f32.mrb[0].mxu0
  %v1123 = vadd.f32 %v1024, %v1122
  %v1124 = vpop.f32.mrb[0].mxu0
  %1125 = vdwg.mxu0
  %1126 = vmatprep.subr.mxu0 0.0
  %v1127 = vand.u32 %v705, 4294901760
  %v1128 = vsub.f32 %v705, %v1127
  %v1129 = vand.u32 %v1128, 4294901760
  %1130 = vmatpush1.msra.mxu0 %v1129
  %1131 = vmatprep.subr.mxu0 0.0
  %v1132 = vand.u32 %v722, 4294901760
  %v1133 = vsub.f32 %v722, %v1132
  %v1134 = vand.u32 %v1133, 4294901760
  %1135 = vmatpush1.msra.mxu0 %v1134
  %1136 = vmatprep.subr.mxu0 0.0
  %1137 = vmatpush1.msra.mxu0 0.0
  %1138 = vmatprep.subr.mxu0 0.0
  %1139 = vmatpush1.msra.mxu0 0.0
  %1140 = vmatprep.subr.mxu0 0.0
  %1141 = vmatpush1.msra.mxu0 0.0
  %1142 = vmatprep.subr.mxu0 0.0
  %1143 = vmatpush1.msra.mxu0 0.0
  %1144 = vmatprep.subr.mxu0 0.0
  %1145 = vmatpush1.msra.mxu0 0.0
  %1146 = vmatprep.subr.mxu0 0.0
  %1147 = vmatpush1.msra.mxu0 0.0
  %1148 = vmatprep.subr.mxu0 0.0
  %1149 = vmatpush1.msra.mxu0 0.0
  %1150 = vmatprep.subr.mxu0 0.0
  %1151 = vmatpush1.msra.mxu0 0.0
  %1152 = vmatprep.subr.mxu0 0.0
  %1153 = vmatpush1.msra.mxu0 0.0
  %1154 = vmatprep.subr.mxu0 0.0
  %1155 = vmatpush1.msra.mxu0 0.0
  %1156 = vmatprep.subr.mxu0 0.0
  %1157 = vmatpush1.msra.mxu0 0.0
  %1158 = vmatprep.subr.mxu0 0.0
  %1159 = vmatpush1.msra.mxu0 0.0
  %1160 = vmatprep.subr.mxu0 0.0
  %1161 = vmatpush1.msra.mxu0 0.0
  %1162 = vmatprep.subr.mxu0 0.0
  %1163 = vmatpush1.msra.mxu0 0.0
  %1164 = vmatprep.subr.mxu0 0.0
  %1165 = vmatpush1.msra.mxu0 0.0
  %1166 = vmatprep.subr.mxu0 0.0
  %1167 = vmatpush1.msra.mxu0 0.0
  %1168 = vmatprep.subr.mxu0 0.0
  %1169 = vmatpush1.msra.mxu0 0.0
  %1170 = vmatprep.subr.mxu0 0.0
  %1171 = vmatpush1.msra.mxu0 0.0
  %1172 = vmatprep.subr.mxu0 0.0
  %1173 = vmatpush1.msra.mxu0 0.0
  %1174 = vmatprep.subr.mxu0 0.0
  %1175 = vmatpush1.msra.mxu0 0.0
  %1176 = vmatprep.subr.mxu0 0.0
  %1177 = vmatpush1.msra.mxu0 0.0
  %1178 = vmatprep.subr.mxu0 0.0
  %1179 = vmatpush1.msra.mxu0 0.0
  %1180 = vmatprep.subr.mxu0 0.0
  %1181 = vmatpush1.msra.mxu0 0.0
  %1182 = vmatprep.subr.mxu0 0.0
  %1183 = vmatpush1.msra.mxu0 0.0
  %1184 = vmatprep.subr.mxu0 0.0
  %1185 = vmatpush1.msra.mxu0 0.0
  %1186 = vmatprep.subr.mxu0 0.0
  %1187 = vmatpush1.msra.mxu0 0.0
  %1188 = vmatprep.subr.mxu0 0.0
  %1189 = vmatpush1.msra.mxu0 0.0
  %1190 = vmatprep.subr.mxu0 0.0
  %1191 = vmatpush1.msra.mxu0 0.0
  %1192 = vmatprep.subr.mxu0 0.0
  %1193 = vmatpush1.msra.mxu0 0.0
  %1194 = vmatprep.subr.mxu0 0.0
  %1195 = vmatpush1.msra.mxu0 0.0
  %1196 = vmatprep.mubr.f32.mxu0 0.0
  %v1197 = vand.u32 %v709, 4294901760
  %1198 = vmatmul.mubr.f32.gmra.mrb[0].mxu0 %v1197
  %v1199 = vpop.f32.mrb[0].mxu0
  %v1200 = vadd.f32 %v1099, %v1199
  %v1201 = vpop.f32.mrb[0].mxu0
  %1202 = vmatprep.mubr.f32.mxu0 0.0
  %v1203 = vand.u32 %v712, 4294901760
  %1204 = vmatmul.mubr.f32.gmra.mrb[0].mxu0 %v1203
  %v1205 = vpop.f32.mrb[0].mxu0
  %v1206 = vadd.f32 %v1107, %v1205
  %v1207 = vpop.f32.mrb[0].mxu0
  %1208 = vmatprep.mubr.f32.mxu0 0.0
  %v1209 = vand.u32 %v715, 4294901760
  %1210 = vmatmul.mubr.f32.gmra.mrb[0].mxu0 %v1209
  %v1211 = vpop.f32.mrb[0].mxu0
  %v1212 = vadd.f32 %v1115, %v1211
  %v1213 = vpop.f32.mrb[0].mxu0
  %1214 = vmatprep.mubr.f32.mxu0 0.0
  %v1215 = vand.u32 %v718, 4294901760
  %1216 = vmatmul.mubr.f32.gmra.mrb[0].mxu0 %v1215
  %v1217 = vpop.f32.mrb[0].mxu0
  %v1218 = vadd.f32 %v1123, %v1217
  %v1219 = vpop.f32.mrb[0].mxu0
  %1220 = vdwg.mxu0
  %1221 = vmatprep.subr.mxu0 0.0
  %v1222 = vand.u32 %v705, 4294901760
  %1223 = vmatpush1.msra.mxu0 %v1222
  %1224 = vmatprep.subr.mxu0 0.0
  %v1225 = vand.u32 %v722, 4294901760
  %1226 = vmatpush1.msra.mxu0 %v1225
  %1227 = vmatprep.subr.mxu0 0.0
  %1228 = vmatpush1.msra.mxu0 0.0
  %1229 = vmatprep.subr.mxu0 0.0
  %1230 = vmatpush1.msra.mxu0 0.0
  %1231 = vmatprep.subr.mxu0 0.0
  %1232 = vmatpush1.msra.mxu0 0.0
  %1233 = vmatprep.subr.mxu0 0.0
  %1234 = vmatpush1.msra.mxu0 0.0
  %1235 = vmatprep.subr.mxu0 0.0
  %1236 = vmatpush1.msra.mxu0 0.0
  %1237 = vmatprep.subr.mxu0 0.0
  %1238 = vmatpush1.msra.mxu0 0.0
  %1239 = vmatprep.subr.mxu0 0.0
  %1240 = vmatpush1.msra.mxu0 0.0
  %1241 = vmatprep.subr.mxu0 0.0
  %1242 = vmatpush1.msra.mxu0 0.0
  %1243 = vmatprep.subr.mxu0 0.0
  %1244 = vmatpush1.msra.mxu0 0.0
  %1245 = vmatprep.subr.mxu0 0.0
  %1246 = vmatpush1.msra.mxu0 0.0
  %1247 = vmatprep.subr.mxu0 0.0
  %1248 = vmatpush1.msra.mxu0 0.0
  %1249 = vmatprep.subr.mxu0 0.0
  %1250 = vmatpush1.msra.mxu0 0.0
  %1251 = vmatprep.subr.mxu0 0.0
  %1252 = vmatpush1.msra.mxu0 0.0
  %1253 = vmatprep.subr.mxu0 0.0
  %1254 = vmatpush1.msra.mxu0 0.0
  %1255 = vmatprep.subr.mxu0 0.0
  %1256 = vmatpush1.msra.mxu0 0.0
  %1257 = vmatprep.subr.mxu0 0.0
  %1258 = vmatpush1.msra.mxu0 0.0
  %1259 = vmatprep.subr.mxu0 0.0
  %1260 = vmatpush1.msra.mxu0 0.0
  %1261 = vmatprep.subr.mxu0 0.0
  %1262 = vmatpush1.msra.mxu0 0.0
  %1263 = vmatprep.subr.mxu0 0.0
  %1264 = vmatpush1.msra.mxu0 0.0
  %1265 = vmatprep.subr.mxu0 0.0
  %1266 = vmatpush1.msra.mxu0 0.0
  %1267 = vmatprep.subr.mxu0 0.0
  %1268 = vmatpush1.msra.mxu0 0.0
  %1269 = vmatprep.subr.mxu0 0.0
  %1270 = vmatpush1.msra.mxu0 0.0
  %1271 = vmatprep.subr.mxu0 0.0
  %1272 = vmatpush1.msra.mxu0 0.0
  %1273 = vmatprep.subr.mxu0 0.0
  %1274 = vmatpush1.msra.mxu0 0.0
  %1275 = vmatprep.subr.mxu0 0.0
  %1276 = vmatpush1.msra.mxu0 0.0
  %1277 = vmatprep.subr.mxu0 0.0
  %1278 = vmatpush1.msra.mxu0 0.0
  %1279 = vmatprep.subr.mxu0 0.0
  %1280 = vmatpush1.msra.mxu0 0.0
  %1281 = vmatprep.subr.mxu0 0.0
  %1282 = vmatpush1.msra.mxu0 0.0
  %1283 = vmatprep.subr.mxu0 0.0
  %1284 = vmatpush1.msra.mxu0 0.0
  %1285 = vmatprep.subr.mxu0 0.0
  %1286 = vmatpush1.msra.mxu0 0.0
  %1287 = vmatprep.mubr.f32.mxu0 0.0
  %v1288 = vand.u32 %v709, 4294901760
  %1289 = vmatmul.mubr.f32.gmra.mrb[0].mxu0 %v1288
  %v1290 = vpop.f32.mrb[0].mxu0
  %v1291 = vadd.f32 %v1200, %v1290
  %v1292 = vpop.f32.mrb[0].mxu0
  %1293 = vmatprep.mubr.f32.mxu0 0.0
  %v1294 = vand.u32 %v712, 4294901760
  %1295 = vmatmul.mubr.f32.gmra.mrb[0].mxu0 %v1294
  %v1296 = vpop.f32.mrb[0].mxu0
  %v1297 = vadd.f32 %v1206, %v1296
  %v1298 = vpop.f32.mrb[0].mxu0
  %1299 = vmatprep.mubr.f32.mxu0 0.0
  %v1300 = vand.u32 %v715, 4294901760
  %1301 = vmatmul.mubr.f32.gmra.mrb[0].mxu0 %v1300
  %v1302 = vpop.f32.mrb[0].mxu0
  %v1303 = vadd.f32 %v1212, %v1302
  %v1304 = vpop.f32.mrb[0].mxu0
  %1305 = vmatprep.mubr.f32.mxu0 0.0
  %v1306 = vand.u32 %v718, 4294901760
  %1307 = vmatmul.mubr.f32.gmra.mrb[0].mxu0 %v1306
  %v1308 = vpop.f32.mrb[0].mxu0
  %v1309 = vadd.f32 %v1218, %v1308
  %v1310 = vpop.f32.mrb[0].mxu0
  %1311 = vdwg.mxu0
  %v1312 = vld [vmem:[%s3] sm:$0x1]
  %vm1313 = vcmask 253952
  %1314 = vst.msk [vmem:[%s5] sm:$0x1] %vm1313, %v1312
  %1315 = vst.msk [vmem:[%s5 + $0x18] sm:$0x1] %vm1313, %v1312
  %v1316 = vld [vmem:[%s4] sm:$0xff]
  %v1317 = vld [vmem:[%s4 + $0x8] sm:$0xff]
  %v1318 = vadd.f32 %v1291, %v1316
  %v1319 = vadd.f32 %v1297, %v1317
  %v1320 = vadd.f32 %v1303, %v1316
  %v1321 = vadd.f32 %v1309, %v1317
  %vm1322 = vcmask 261120
  %1323 = vst.msk [vmem:[%s5 + $0x1] sm:$0xff] %vm1322, %v1318
  %1324 = vst.msk [vmem:[%s5 + $0x9] sm:$0xff] %vm1322, %v1319
  %1325 = vst.msk [vmem:[%s5 + $0x19] sm:$0xff] %vm1322, %v1320
  %1326 = vst.msk [vmem:[%s5 + $0x21] sm:$0xff] %vm1322, %v1321
  // Predicated region
  $region22: #{tpu_custom_call.1} parent=0 // pred_check
    _
  $region23: #{tpu_custom_call.1} parent=0 // pred_check_branch
    %1328 = sbr.rel (0) target = $region25
  $region24: #{tpu_custom_call.1} parent=0 // pred_region
    _
  $region25: #{tpu_custom_call.1} parent=0 // pred_fallthru
    _
  // Predicated region
  $region26: #{tpu_custom_call.1} parent=0 // pred_check
    _
  $region27: #{tpu_custom_call.1} parent=0 // pred_check_branch
    %1330 = sbr.rel (0) target = $region29
  $region28: #{tpu_custom_call.1} parent=0 // pred_region
    _
  $region29: #{tpu_custom_call.1} parent=0 // pred_fallthru
    _

</llo_original>
